<compile_context>
chip_gen: v7x
topology: tpu7x:2x2x1
jax: 0.10.0
libtpu: 0.0.40
codegen_flags: <defaults>
</compile_context>

<pallas_src>
import math

import jax
import jax.numpy as jnp
from jax.experimental import pallas as pl
from jax.experimental.pallas import tpu as pltpu

LANES = 128      # vreg lane width; every packed segment is lane-padded to this
SUB_BF16 = 16    # bf16 sublane packing: slab row offsets padded to multiples of 16


def _round_up(x, m):
    return (x + m - 1) // m * m


# ---------------------------------------------------------------------------
# Fused kernel: decode heads (amp | angle) + ETF logit in one launch.
#   x_ref   : (M, E)        bf16  flattened decode input (M = B * N)
#   f_ref   : (B, E)        bf16  classification feature
#   c_ref   : (rows, 128)   bf16  packed constant slab (w1|b1|w2|b2|wcls)
# outputs:
#   dec_ref   : (M, 128)    f32   [amp | angle]  (lane-dense, unmasked stores)
#   logit_ref : (B, 128)    f32   lane-padded logit (cols C:128 are zero)
# ---------------------------------------------------------------------------
def _make_kernel(E, layout):
    w1_off = layout["w1"]
    b1_off = layout["b1"]
    w2_off = layout["w2"]
    b2_off = layout["b2"]
    wcls_off = layout["wcls"]

    def kernel(x_ref, f_ref, c_ref, dec_ref, logit_ref):
        # ---- decode heads: h = tanh(x @ [W1a.T | W1g.T] + [b1a | b1g]) ----
        x = x_ref[...]                                      # (M, E)   bf16
        w1 = c_ref[w1_off:w1_off + E, :]                    # (E, 128) bf16
        b1 = c_ref[b1_off:b1_off + 1, :]                    # (1, 128) bf16
        h = jnp.tanh(
            jnp.dot(x, w1, preferred_element_type=jnp.float32) + b1)  # (M,128) f32
        # padded cols 2E:128 of h are exactly tanh(0+0)=0; w2 rows 2E:128 are 0.
        w2 = c_ref[w2_off:w2_off + LANES, :]                # (128, 128) bf16
        b2 = c_ref[b2_off:b2_off + 1, :]                    # (1, 128)   bf16
        dec_ref[...] = (
            jnp.dot(h.astype(jnp.bfloat16), w2,
                    preferred_element_type=jnp.float32) + b2)          # (M,128) f32

        # ---- classification: logit = feature @ (rotate.weight @ ETF) ----
        wcls = c_ref[wcls_off:wcls_off + E, :]              # (E, 128) bf16
        logit_ref[...] = jnp.dot(
            f_ref[...], wcls, preferred_element_type=jnp.float32)      # (B,128) f32

    return kernel


def bsi_block_apply(x, feature, fused):
    """Fused BSIblock heads.

    x       : (B, N, E)  decode input (post-transformer; transformer not provided)
    feature : (B, E)     classification feature (forward_feature not provided)
    returns (amp, angle, logit, feature) with amp/angle: (B, N, T), logit: (B, C)
    """
    B, N, E = x.shape
    T, C = fused["T"], fused["C"]
    M = B * N
    Bf = feature.shape[0]
    consts = fused["consts"]

    x2d = x.reshape(M, E).astype(jnp.bfloat16)
    f_bf = feature.astype(jnp.bfloat16)

    vmem = pl.BlockSpec(memory_space=pltpu.MemorySpace.VMEM)
    kernel = _make_kernel(E, fused["layout"])

    cost = pl.CostEstimate(
        flops=2 * M * E * LANES + 2 * M * LANES * LANES + 2 * Bf * E * LANES,
        transcendentals=M * LANES,
        bytes_accessed=(x2d.size * 2 + f_bf.size * 2 + consts.size * 2
                        + M * LANES * 4 + Bf * LANES * 4),
    )

    dec, logit = pl.pallas_call(
        kernel,
        out_shape=(jax.ShapeDtypeStruct((M, LANES), jnp.float32),
                   jax.ShapeDtypeStruct((Bf, LANES), jnp.float32)),
        in_specs=[vmem, vmem, vmem],
        out_specs=(vmem, vmem),
        cost_estimate=cost,
    )(x2d, f_bf, consts)

    amp = dec[:, :T].reshape(B, N, T)
    angle = dec[:, T:2 * T].reshape(B, N, T)
    logit = logit[:, :C]
    return amp, angle, logit, feature


# ---------------------------------------------------------------------------
# Parameter construction (shapes from BSIblock.__init__, torch Linear layout).
# ---------------------------------------------------------------------------
def make_params(key, embed_dim, num_t_pints, n_classes):
    keys = jax.random.split(key, 5)

    def lin(k, out_dim, in_dim):
        kw, kb = jax.random.split(k)
        s = 1.0 / math.sqrt(in_dim)
        w = jax.random.uniform(kw, (out_dim, in_dim), jnp.float32, -s, s)
        b = jax.random.uniform(kb, (out_dim,), jnp.float32, -s, s)
        return w, b

    p = {}
    # decode_task_layer = Linear(E,E) -> Tanh -> Linear(E,T)
    p["dec_amp_w1"], p["dec_amp_b1"] = lin(keys[0], embed_dim, embed_dim)
    p["dec_amp_w2"], p["dec_amp_b2"] = lin(keys[1], num_t_pints, embed_dim)
    # decode_task_layer_angle = Linear(E,E) -> Tanh -> Linear(E,T)
    p["dec_ang_w1"], p["dec_ang_b1"] = lin(keys[2], embed_dim, embed_dim)
    p["dec_ang_w2"], p["dec_ang_b2"] = lin(keys[3], num_t_pints, embed_dim)
    # rotate: orthogonal Linear(E, E, bias=False)
    # TODO(synk): geotorch.orthogonal parametrization replaced by a
    # deterministic QR-orthogonal surrogate weight.
    q, _ = jnp.linalg.qr(
        jax.random.normal(keys[4], (embed_dim, embed_dim), jnp.float32))
    p["rotate_weight"] = q
    # ETF = (I - ones/E)[:, :n_classes]   (feature_num >= class_num branch)
    etf_full = (jnp.eye(embed_dim, dtype=jnp.float32)
                - jnp.ones((embed_dim, embed_dim), jnp.float32) / embed_dim)
    p["ETF"] = etf_full[:, :n_classes]
    return p


def fuse_params(p):
    """One-time weight fusion (do NOT call per forward):
      * pre-transpose and concatenate the two decode heads,
      * build the block-diagonal second weight (row-padded to 128),
      * fold rotate.weight @ ETF into a single lane-padded (E, 128) constant,
      * pack everything into ONE bf16 slab of shape (rows, 128) with every
        segment's row offset a multiple of 16 (bf16 sublane tile)."""
    E = p["dec_amp_w1"].shape[0]
    T = p["dec_amp_w2"].shape[0]
    C = p["ETF"].shape[1]
    assert 2 * E <= LANES and 2 * T <= LANES and C <= LANES, (
        "packed-slab layout assumes every lane dim fits in 128; "
        "revisit the layout (and split the second dot) if the module is scaled up")

    def pad_lanes(a):
        return jnp.pad(a, ((0, 0), (0, LANES - a.shape[1])))

    # decode first layer: [W1a.T | W1g.T] and [b1a | b1g], lane-padded with zeros
    w1 = pad_lanes(jnp.concatenate([p["dec_amp_w1"].T, p["dec_ang_w1"].T], axis=1))
    b1 = pad_lanes(jnp.concatenate([p["dec_amp_b1"], p["dec_ang_b1"]])[None, :])
    # decode second layer: blockdiag(W2a.T, W2g.T), rows padded to 128 (K of 2nd dot)
    w2 = jnp.zeros((LANES, LANES), jnp.float32)
    w2 = w2.at[:E, :T].set(p["dec_amp_w2"].T)
    w2 = w2.at[E:2 * E, T:2 * T].set(p["dec_ang_w2"].T)
    b2 = pad_lanes(jnp.concatenate([p["dec_amp_b2"], p["dec_ang_b2"]])[None, :])
    # classification: rotate.weight @ ETF folded into one (E, C) constant, lane-padded
    wcls = pad_lanes(p["rotate_weight"] @ p["ETF"])

    segs = [("w1", w1), ("b1", b1), ("w2", w2), ("b2", b2), ("wcls", wcls)]
    layout, rows, off = {}, [], 0
    for name, seg in segs:
        layout[name] = off
        nrows = _round_up(seg.shape[0], SUB_BF16)
        rows.append(jnp.pad(seg, ((0, nrows - seg.shape[0]), (0, 0))))
        off += nrows
    consts = jnp.concatenate(rows, axis=0).astype(jnp.bfloat16)   # (rows, 128)
    return {"consts": consts, "layout": layout, "E": E, "T": T, "C": C}


if __name__ == "__main__":
    # args: embed_dim=32, num_t_pints=64, n_classes=4, num_patches=16,
    #       num_cut=2 -> sequence length N = 8, batch B = 2.
    B, N, E, T, C = 2, 8, 32, 64, 4
    key = jax.random.PRNGKey(0)
    kx, kf, kp = jax.random.split(key, 3)

    params = make_params(kp, embed_dim=E, num_t_pints=T, n_classes=C)
    fused = fuse_params(params)
    fused["consts"] = jax.block_until_ready(fused["consts"])

    x = jax.random.normal(kx, (B, N, E), jnp.float32)       # forward_dec input
    feature = jax.random.normal(kf, (B, E), jnp.float32)    # forward "feature"

    amp, ang, logit, feat_out = bsi_block_apply(x, feature, fused)
    jax.block_until_ready((amp, ang, logit, feat_out))

    # Pure-JAX reference (torch Linear semantics: y = x @ W.T + b), f32 weights.
    x2d = x.reshape(B * N, E)
    ref_amp = (jnp.tanh(x2d @ params["dec_amp_w1"].T + params["dec_amp_b1"])
               @ params["dec_amp_w2"].T + params["dec_amp_b2"]).reshape(B, N, T)
    ref_ang = (jnp.tanh(x2d @ params["dec_ang_w1"].T + params["dec_ang_b1"])
               @ params["dec_ang_w2"].T + params["dec_ang_b2"]).reshape(B, N, T)
    ref_logit = feature @ params["rotate_weight"] @ params["ETF"]

    # Tolerances loosened vs. the f32 version: weights/activations are bf16 on
    # the MXU (f32 accumulation), per the performance review.
    assert jnp.allclose(amp, ref_amp, rtol=3e-2, atol=3e-2)
    assert jnp.allclose(ang, ref_ang, rtol=3e-2, atol=3e-2)
    assert jnp.allclose(logit, ref_logit, rtol=3e-2, atol=3e-2)
    assert amp.shape == (B, N, T) and ang.shape == (B, N, T)
    assert logit.shape == (B, C) and feat_out.shape == (B, E)

    print("KERNEL_OK")
</pallas_src>

<mosaic_0001>
module attributes {stable_mosaic.version = 11 : i64} {
  func.func @kernel(%arg0: memref<16x32xbf16, #tpu.memory_space<vmem>>, %arg1: memref<2x32xbf16, #tpu.memory_space<vmem>>, %arg2: memref<224x128xbf16, #tpu.memory_space<vmem>>, %arg3: memref<16x128xf32, #tpu.memory_space<vmem>>, %arg4: memref<2x128xf32, #tpu.memory_space<vmem>>) attributes {dimension_semantics = [], scalar_prefetch = 0 : i64, scratch_operands = 0 : i64, tpu.core_type = #tpu.core_type<tc>} {
    %c0 = arith.constant 0 : index
    %c0_0 = arith.constant 0 : index
    %0 = vector.load %arg0[%c0, %c0_0] : memref<16x32xbf16, #tpu.memory_space<vmem>>, vector<16x32xbf16>
    %c0_1 = arith.constant 0 : index
    %c0_2 = arith.constant 0 : index
    %1 = vector.load %arg2[%c0_1, %c0_2] : memref<224x128xbf16, #tpu.memory_space<vmem>>, vector<32x128xbf16>
    %c32 = arith.constant 32 : index
    %c0_3 = arith.constant 0 : index
    %2 = vector.load %arg2[%c32, %c0_3] : memref<224x128xbf16, #tpu.memory_space<vmem>>, vector<1x128xbf16>
    %cst = arith.constant dense<0.000000e+00> : vector<16x128xf32>
    %3 = tpu.matmul %0, %1, %cst {dimension_numbers = #tpu.dot_dimension_numbers<[1], [0], [0], [1], [0, 0, 1, 1], [], []>} : vector<16x32xbf16>, vector<32x128xbf16>, vector<16x128xf32> -> vector<16x128xf32>
    %4 = arith.extf %2 : vector<1x128xbf16> to vector<1x128xf32>
    %5 = vector.broadcast %4 : vector<1x128xf32> to vector<16x128xf32>
    %6 = arith.addf %3, %5 : vector<16x128xf32>
    %7 = math.tanh %6 : vector<16x128xf32>
    %c48 = arith.constant 48 : index
    %c0_4 = arith.constant 0 : index
    %8 = vector.load %arg2[%c48, %c0_4] : memref<224x128xbf16, #tpu.memory_space<vmem>>, vector<128x128xbf16>
    %c176 = arith.constant 176 : index
    %c0_5 = arith.constant 0 : index
    %9 = vector.load %arg2[%c176, %c0_5] : memref<224x128xbf16, #tpu.memory_space<vmem>>, vector<1x128xbf16>
    %10 = arith.truncf %7 : vector<16x128xf32> to vector<16x128xbf16>
    %cst_6 = arith.constant dense<0.000000e+00> : vector<16x128xf32>
    %11 = tpu.matmul %10, %8, %cst_6 {dimension_numbers = #tpu.dot_dimension_numbers<[1], [0], [0], [1], [0, 0, 1, 1], [], []>} : vector<16x128xbf16>, vector<128x128xbf16>, vector<16x128xf32> -> vector<16x128xf32>
    %12 = arith.extf %9 : vector<1x128xbf16> to vector<1x128xf32>
    %13 = vector.broadcast %12 : vector<1x128xf32> to vector<16x128xf32>
    %14 = arith.addf %11, %13 : vector<16x128xf32>
    %c0_7 = arith.constant 0 : index
    %c0_8 = arith.constant 0 : index
    %15 = vector.load %arg3[%c0_7, %c0_8] : memref<16x128xf32, #tpu.memory_space<vmem>>, vector<16x128xf32>
    tpu.vector_store %arg3[%c0_7, %c0_8], %14 {strides = array<i32>} : memref<16x128xf32, #tpu.memory_space<vmem>>, vector<16x128xf32>,
    %c192 = arith.constant 192 : index
    %c0_9 = arith.constant 0 : index
    %16 = vector.load %arg2[%c192, %c0_9] : memref<224x128xbf16, #tpu.memory_space<vmem>>, vector<32x128xbf16>
    %c0_10 = arith.constant 0 : index
    %c0_11 = arith.constant 0 : index
    %17 = vector.load %arg1[%c0_10, %c0_11] : memref<2x32xbf16, #tpu.memory_space<vmem>>, vector<2x32xbf16>
    %cst_12 = arith.constant dense<0.000000e+00> : vector<2x128xf32>
    %18 = tpu.matmul %17, %16, %cst_12 {dimension_numbers = #tpu.dot_dimension_numbers<[1], [0], [0], [1], [0, 0, 1, 1], [], []>} : vector<2x32xbf16>, vector<32x128xbf16>, vector<2x128xf32> -> vector<2x128xf32>
    %c0_13 = arith.constant 0 : index
    %c0_14 = arith.constant 0 : index
    %19 = vector.load %arg4[%c0_13, %c0_14] : memref<2x128xf32, #tpu.memory_space<vmem>>, vector<2x128xf32>
    tpu.vector_store %arg4[%c0_13, %c0_14], %18 {strides = array<i32>} : memref<2x128xf32, #tpu.memory_space<vmem>>, vector<2x128xf32>,
    return
  }
}

</mosaic_0001>

<llo_original>
// kernel: tpu_custom_call.1
$region0: #{tpu_custom_call.1}
  #allocation0 [shape = 'u32[]', space=smem, size = 0x4, offset = 0x4, fixed_abs, tag = 'smem constant byte address 0x4 - core index']
  #allocation1 [shape = 'u32[144,128]{1,0:T(1,128)}', space=vmem, size = 0x12000, scoped, tag = 'internal scratch']
  %s0 = inlined_call_operand.hbm [shape: bf16[16,32], index: 0, kind: input, shape index: {}]
  %s1 = inlined_call_operand.vmem [shape: bf16[2,32], index: 1, kind: input, shape index: {}]
  %s2 = inlined_call_operand.hbm [shape: bf16[224,128], index: 2, kind: input, shape index: {}]
  %s3 = inlined_call_operand.hbm [shape: f32[16,128], index: 3, kind: output, shape index: {0}]
  %s4 = inlined_call_operand.hbm [shape: f32[2,128], index: 4, kind: output, shape index: {1}]
  %5 = xla_tuple %s3, %s4
  %s6 = sld [smem:[#allocation0]]
  $region38: #{tpu_custom_call.1} parent=0
    _
  %s8 = ssub.s32 1, %s6
  %s9 = scalar_select 0, %s8, %s6
  $region1: #{tpu_custom_call.1} parent=0
    #allocation2 [shape = 'u8[4096]{0}', space=vmem, size = 0x1000, scoped, tag = 'input window, operand 0, single buffered']
    #allocation3 [shape = 's32[1]{0}', space=sflag, size = 0x4, scoped, tag = 'scoped memory for tpu_custom_call.1']
    #allocation4 [shape = 's32[1]{0}', space=sflag, size = 0x4, scoped, tag = 'scoped memory for tpu_custom_call.1']
    #allocation5 [shape = 'u8[57344]{0}', space=vmem, size = 0xe000, scoped, tag = 'input window, operand 2, single buffered']
    #allocation6 [shape = 's32[1]{0}', space=sflag, size = 0x4, scoped, tag = 'scoped memory for tpu_custom_call.1']
    #allocation7 [shape = 'u8[8192]{0}', space=vmem, size = 0x2000, scoped, tag = 'output window, operand 0, single buffered']
    #allocation8 [shape = 'u8[1024]{0}', space=vmem, size = 0x400, scoped, tag = 'output window, operand 1, single buffered']
    #allocation9 [shape = 's32[1]{0}', space=sflag, size = 0x4, scoped, tag = 'scoped memory for tpu_custom_call.1']
    %10 = vsyncpa [#allocation3], 0
    %11 = vsyncpa [#allocation6], 0
    %12 = vsyncpa [#allocation4], 0
    %13 = vsyncpa [#allocation9], 0
    // Predicated region
    $region2: #{tpu_custom_call.1} parent=1 // pred_check
      _
    $region3: #{tpu_custom_call.1} parent=1 // pred_check_branch
      %15 = sbr.rel (0) target = $region5
    $region4: #{tpu_custom_call.1} parent=1 // pred_region
      %s17 = ssub.s32 128, 128
      %18 = vsyncadd [#allocation3], %s17
      %s19 = sshll.u32 [#allocation2], 4
      %s20 = int_to_ptr.vmem [resolvable:$true] %s19
      %25 = dma.hbm_to_vmem [thread:$0]  %s0, 128, %s20, [#allocation3], 64, 64, 4
    $region5: #{tpu_custom_call.1} parent=1 // pred_fallthru
      _
    // Predicated region
    $region6: #{tpu_custom_call.1} parent=1 // pred_check
      _
    $region7: #{tpu_custom_call.1} parent=1 // pred_check_branch
      %27 = sbr.rel (0) target = $region9
    $region8: #{tpu_custom_call.1} parent=1 // pred_region
      _
    $region9: #{tpu_custom_call.1} parent=1 // pred_fallthru
      _
    // Predicated region
    $region10: #{tpu_custom_call.1} parent=1 // pred_check
      _
    $region11: #{tpu_custom_call.1} parent=1 // pred_check_branch
      %29 = sbr.rel (0) target = $region13
    $region12: #{tpu_custom_call.1} parent=1 // pred_region
      %s31 = ssub.s32 1792, 1792
      %32 = vsyncadd [#allocation6], %s31
      %s33 = sshll.u32 [#allocation5], 4
      %s34 = int_to_ptr.vmem [resolvable:$true] %s33
      %39 = dma.hbm_to_vmem [thread:$0]  %s2, 1792, %s34, [#allocation6], 64, 64, 4
    $region13: #{tpu_custom_call.1} parent=1 // pred_fallthru
      _
    // Predicated region
    $region14: #{tpu_custom_call.1} parent=1 // pred_check
      _
    $region15: #{tpu_custom_call.1} parent=1 // pred_check_branch
      %41 = sbr.rel (0) target = $region17
    $region16: #{tpu_custom_call.1} parent=1 // pred_region
      %42 = dma.done [#allocation3], 128
    $region17: #{tpu_custom_call.1} parent=1 // pred_fallthru
      _
    // Predicated region
    $region18: #{tpu_custom_call.1} parent=1 // pred_check
      _
    $region19: #{tpu_custom_call.1} parent=1 // pred_check_branch
      %44 = sbr.rel (0) target = $region21
    $region20: #{tpu_custom_call.1} parent=1 // pred_region
      %45 = dma.done [#allocation6], 1792
    $region21: #{tpu_custom_call.1} parent=1 // pred_fallthru
      _
    %v47 = vld [vmem:[#allocation2] sm:$0xf]
    %v48 = vld [vmem:[#allocation2 + $0x4] sm:$0xf]
    %v49 = vld [vmem:[#allocation5] sm:$0xf]
    %v50 = vld [vmem:[#allocation5 + $0x4] sm:$0xf]
    %v51 = vld [vmem:[#allocation5 + $0x8] sm:$0xf]
    %v52 = vld [vmem:[#allocation5 + $0xc] sm:$0xf]
    %v53 = vld [vmem:[#allocation5 + $0x10] sm:$0x1]
    %v54 = vunpack.c.l.bf16 %v53
    %v55 = vlaneseq
    %v56 = vshrl.u32 %v55, 7
    %v57 = vsub.s32 0, %v56
    %v58 = vrot.slane %v54, %v57
    %v61 = vunpack.c.l.b16 %v47
    %v62 = vunpack.c.l.b16 %v48
    %v63 = vpack.c.b16 %v62, %v61
    %v68 = vunpack.c.l.b16 %v49
    %v69 = vunpack.c.l.b16 %v50
    %v70 = vunpack.c.l.b16 %v51
    %v71 = vunpack.c.l.b16 %v52
    %v72 = vpack.c.b16 %v69, %v68
    %v73 = vpack.c.b16 %v71, %v70
    %vm76 = vcmask 261120
    %v78 = vsel %vm76, %v63, 0
    %80 = vmatprep.subr.bf16.mxu0 0
    %81 = vmatpush1.bf16.msra.mxu0 %v72
    %82 = vmatprep.subr.bf16.mxu0 0
    %83 = vmatpush1.bf16.msra.mxu0 %v73
    %84 = vmatprep.subr.bf16.mxu0 0
    %85 = vmatpush1.bf16.msra.mxu0 0
    %86 = vmatprep.subr.bf16.mxu0 0
    %87 = vmatpush1.bf16.msra.mxu0 0
    %88 = vmatprep.subr.bf16.mxu0 0
    %89 = vmatpush1.bf16.msra.mxu0 0
    %90 = vmatprep.subr.bf16.mxu0 0
    %91 = vmatpush1.bf16.msra.mxu0 0
    %92 = vmatprep.subr.bf16.mxu0 0
    %93 = vmatpush1.bf16.msra.mxu0 0
    %94 = vmatprep.subr.bf16.mxu0 0
    %95 = vmatpush1.bf16.msra.mxu0 0
    %96 = vmatprep.subr.bf16.mxu0 0
    %97 = vmatpush1.bf16.msra.mxu0 0
    %98 = vmatprep.subr.bf16.mxu0 0
    %99 = vmatpush1.bf16.msra.mxu0 0
    %100 = vmatprep.subr.bf16.mxu0 0
    %101 = vmatpush1.bf16.msra.mxu0 0
    %102 = vmatprep.subr.bf16.mxu0 0
    %103 = vmatpush1.bf16.msra.mxu0 0
    %104 = vmatprep.subr.bf16.mxu0 0
    %105 = vmatpush1.bf16.msra.mxu0 0
    %106 = vmatprep.subr.bf16.mxu0 0
    %107 = vmatpush1.bf16.msra.mxu0 0
    %108 = vmatprep.subr.bf16.mxu0 0
    %109 = vmatpush1.bf16.msra.mxu0 0
    %110 = vmatprep.subr.bf16.mxu0 0
    %111 = vmatpush1.bf16.msra.mxu0 0
    %112 = vmatprep.mubr.bf16.mxu0 0
    %113 = vmatmul.mubr.bf16.gmra.mrb[0].mxu0 %v78
    %v114 = vpop.f32.mrb[0].mxu0
    %v115 = vadd.f32 %v58, %v114
    %v116 = vpop.f32.mrb[0].mxu0
    %v117 = vpop.f32.mrb[0].mxu0
    %v118 = vadd.f32 %v58, %v117
    %v119 = vpop.f32.mrb[0].mxu0
    %120 = vdwg.mxu0
    %v121 = vtanh.pop %v115
    %v122 = vtanh.pop %v118
    %v123 = vld [vmem:[#allocation5 + $0x18] sm:$0xf]
    %v124 = vld [vmem:[#allocation5 + $0x1c] sm:$0xf]
    %v125 = vld [vmem:[#allocation5 + $0x20] sm:$0xf]
    %v126 = vld [vmem:[#allocation5 + $0x24] sm:$0xf]
    %v127 = vld [vmem:[#allocation5 + $0x28] sm:$0xf]
    %v128 = vld [vmem:[#allocation5 + $0x2c] sm:$0xf]
    %v129 = vld [vmem:[#allocation5 + $0x30] sm:$0xf]
    %v130 = vld [vmem:[#allocation5 + $0x34] sm:$0xf]
    %v131 = vld [vmem:[#allocation5 + $0x38] sm:$0xf]
    %v132 = vld [vmem:[#allocation5 + $0x3c] sm:$0xf]
    %v133 = vld [vmem:[#allocation5 + $0x40] sm:$0xf]
    %v134 = vld [vmem:[#allocation5 + $0x44] sm:$0xf]
    %v135 = vld [vmem:[#allocation5 + $0x48] sm:$0xf]
    %v136 = vld [vmem:[#allocation5 + $0x4c] sm:$0xf]
    %v137 = vld [vmem:[#allocation5 + $0x50] sm:$0xf]
    %v138 = vld [vmem:[#allocation5 + $0x54] sm:$0xf]
    %v139 = vld [vmem:[#allocation5 + $0x58] sm:$0x1]
    %v140 = vpack.c.bf16 %v122, %v121
    %v141 = vunpack.c.l.bf16 %v139
    %v142 = vlaneseq
    %v143 = vshrl.u32 %v142, 7
    %v144 = vsub.s32 0, %v143
    %v145 = vrot.slane %v141, %v144
    %v162 = vunpack.c.l.b16 %v123
    %v163 = vunpack.c.l.b16 %v124
    %v164 = vunpack.c.l.b16 %v125
    %v165 = vunpack.c.l.b16 %v126
    %v166 = vunpack.c.l.b16 %v127
    %v167 = vunpack.c.l.b16 %v128
    %v168 = vunpack.c.l.b16 %v129
    %v169 = vunpack.c.l.b16 %v130
    %v170 = vunpack.c.l.b16 %v131
    %v171 = vunpack.c.l.b16 %v132
    %v172 = vunpack.c.l.b16 %v133
    %v173 = vunpack.c.l.b16 %v134
    %v174 = vunpack.c.l.b16 %v135
    %v175 = vunpack.c.l.b16 %v136
    %v176 = vunpack.c.l.b16 %v137
    %v177 = vunpack.c.l.b16 %v138
    %v178 = vpack.c.b16 %v163, %v162
    %v179 = vpack.c.b16 %v165, %v164
    %v180 = vpack.c.b16 %v167, %v166
    %v181 = vpack.c.b16 %v169, %v168
    %v182 = vpack.c.b16 %v171, %v170
    %v183 = vpack.c.b16 %v173, %v172
    %v184 = vpack.c.b16 %v175, %v174
    %v185 = vpack.c.b16 %v177, %v176
    %194 = vmatprep.subr.bf16.mxu0 0
    %195 = vmatpush1.bf16.msra.mxu0 %v178
    %196 = vmatprep.subr.bf16.mxu0 0
    %197 = vmatpush1.bf16.msra.mxu0 %v179
    %198 = vmatprep.subr.bf16.mxu0 0
    %199 = vmatpush1.bf16.msra.mxu0 %v180
    %200 = vmatprep.subr.bf16.mxu0 0
    %201 = vmatpush1.bf16.msra.mxu0 %v181
    %202 = vmatprep.subr.bf16.mxu0 0
    %203 = vmatpush1.bf16.msra.mxu0 %v182
    %204 = vmatprep.subr.bf16.mxu0 0
    %205 = vmatpush1.bf16.msra.mxu0 %v183
    %206 = vmatprep.subr.bf16.mxu0 0
    %207 = vmatpush1.bf16.msra.mxu0 %v184
    %208 = vmatprep.subr.bf16.mxu0 0
    %209 = vmatpush1.bf16.msra.mxu0 %v185
    %210 = vmatprep.subr.bf16.mxu0 0
    %211 = vmatpush1.bf16.msra.mxu0 0
    %212 = vmatprep.subr.bf16.mxu0 0
    %213 = vmatpush1.bf16.msra.mxu0 0
    %214 = vmatprep.subr.bf16.mxu0 0
    %215 = vmatpush1.bf16.msra.mxu0 0
    %216 = vmatprep.subr.bf16.mxu0 0
    %217 = vmatpush1.bf16.msra.mxu0 0
    %218 = vmatprep.subr.bf16.mxu0 0
    %219 = vmatpush1.bf16.msra.mxu0 0
    %220 = vmatprep.subr.bf16.mxu0 0
    %221 = vmatpush1.bf16.msra.mxu0 0
    %222 = vmatprep.subr.bf16.mxu0 0
    %223 = vmatpush1.bf16.msra.mxu0 0
    %224 = vmatprep.subr.bf16.mxu0 0
    %225 = vmatpush1.bf16.msra.mxu0 0
    %226 = vmatprep.mubr.bf16.mxu0 0
    %227 = vmatmul.mubr.bf16.gmra.mrb[0].mxu0 %v140
    %v228 = vpop.f32.mrb[0].mxu0
    %v229 = vadd.f32 %v145, %v228
    %v230 = vpop.f32.mrb[0].mxu0
    %v231 = vpop.f32.mrb[0].mxu0
    %v232 = vadd.f32 %v145, %v231
    %v233 = vpop.f32.mrb[0].mxu0
    %234 = vdwg.mxu0
    %235 = vst [vmem:[#allocation7] sm:$0xff] %v229
    %236 = vst [vmem:[#allocation7 + $0x8] sm:$0xff] %v232
    %v237 = vld [vmem:[#allocation5 + $0x60] sm:$0xf]
    %v238 = vld [vmem:[#allocation5 + $0x64] sm:$0xf]
    %v239 = vld [vmem:[#allocation5 + $0x68] sm:$0xf]
    %v240 = vld [vmem:[#allocation5 + $0x6c] sm:$0xf]
    %v241 = vld [vmem:[%s1] sm:$0x1]
    %v246 = vunpack.c.l.b16 %v237
    %v247 = vunpack.c.l.b16 %v238
    %v248 = vunpack.c.l.b16 %v239
    %v249 = vunpack.c.l.b16 %v240
    %v250 = vpack.c.b16 %v247, %v246
    %v251 = vpack.c.b16 %v249, %v248
    %v255 = vsel %vm76, %v241, 0
    %257 = vmatprep.subr.bf16.mxu0 0
    %258 = vmatpush1.bf16.msra.mxu0 %v250
    %259 = vmatprep.subr.bf16.mxu0 0
    %260 = vmatpush1.bf16.msra.mxu0 %v251
    %261 = vmatprep.subr.bf16.mxu0 0
    %262 = vmatpush1.bf16.msra.mxu0 0
    %263 = vmatprep.subr.bf16.mxu0 0
    %264 = vmatpush1.bf16.msra.mxu0 0
    %265 = vmatprep.subr.bf16.mxu0 0
    %266 = vmatpush1.bf16.msra.mxu0 0
    %267 = vmatprep.subr.bf16.mxu0 0
    %268 = vmatpush1.bf16.msra.mxu0 0
    %269 = vmatprep.subr.bf16.mxu0 0
    %270 = vmatpush1.bf16.msra.mxu0 0
    %271 = vmatprep.subr.bf16.mxu0 0
    %272 = vmatpush1.bf16.msra.mxu0 0
    %273 = vmatprep.subr.bf16.mxu0 0
    %274 = vmatpush1.bf16.msra.mxu0 0
    %275 = vmatprep.subr.bf16.mxu0 0
    %276 = vmatpush1.bf16.msra.mxu0 0
    %277 = vmatprep.subr.bf16.mxu0 0
    %278 = vmatpush1.bf16.msra.mxu0 0
    %279 = vmatprep.subr.bf16.mxu0 0
    %280 = vmatpush1.bf16.msra.mxu0 0
    %281 = vmatprep.subr.bf16.mxu0 0
    %282 = vmatpush1.bf16.msra.mxu0 0
    %283 = vmatprep.subr.bf16.mxu0 0
    %284 = vmatpush1.bf16.msra.mxu0 0
    %285 = vmatprep.subr.bf16.mxu0 0
    %286 = vmatpush1.bf16.msra.mxu0 0
    %287 = vmatprep.subr.bf16.mxu0 0
    %288 = vmatpush1.bf16.msra.mxu0 0
    %289 = vmatprep.mubr.bf16.mxu0 0
    %290 = vmatmul.mubr.bf16.gmra.mrb[0].mxu0 %v255
    %v291 = vpop.f32.mrb[0].mxu0
    %v292 = vadd.f32 0.0, %v291
    %v293 = vpop.f32.mrb[0].mxu0
    %v294 = vpop.f32.mrb[0].mxu0
    %v295 = vpop.f32.mrb[0].mxu0
    %296 = vdwg.mxu0
    %297 = vst [vmem:[#allocation8] sm:$0x3] %v292
    // Predicated region
    $region22: #{tpu_custom_call.1} parent=1 // pred_check
      _
    $region23: #{tpu_custom_call.1} parent=1 // pred_check_branch
      %299 = sbr.rel (0) target = $region25
    $region24: #{tpu_custom_call.1} parent=1 // pred_region
      %s301 = ssub.s32 256, 256
      %302 = vsyncadd [#allocation4], %s301
      %s303 = sshll.u32 [#allocation7], 4
      %s304 = int_to_ptr.vmem [resolvable:$true] %s303
      %309 = dma.vmem_to_hbm [thread:$0]  %s304, 256, %s3, [#allocation4], 128, 128, 8
    $region25: #{tpu_custom_call.1} parent=1 // pred_fallthru
      _
    // Predicated region
    $region26: #{tpu_custom_call.1} parent=1 // pred_check
      _
    $region27: #{tpu_custom_call.1} parent=1 // pred_check_branch
      %311 = sbr.rel (0) target = $region29
    $region28: #{tpu_custom_call.1} parent=1 // pred_region
      %s313 = ssub.s32 32, 32
      %314 = vsyncadd [#allocation9], %s313
      %s316 = sshll.u32 [#allocation8], 4
      %s317 = int_to_ptr.vmem [resolvable:$true] %s316
      %319 = dma.vmem_to_hbm [thread:$0]  %s317, 32, %s4, [#allocation9]
    $region29: #{tpu_custom_call.1} parent=1 // pred_fallthru
      _
    // Predicated region
    $region30: #{tpu_custom_call.1} parent=1 // pred_check
      _
    $region31: #{tpu_custom_call.1} parent=1 // pred_check_branch
      %321 = sbr.rel (0) target = $region33
    $region32: #{tpu_custom_call.1} parent=1 // pred_region
      %322 = dma.done [#allocation4], 256
    $region33: #{tpu_custom_call.1} parent=1 // pred_fallthru
      _
    // Predicated region
    $region34: #{tpu_custom_call.1} parent=1 // pred_check
      _
    $region35: #{tpu_custom_call.1} parent=1 // pred_check_branch
      %324 = sbr.rel (0) target = $region37
    $region36: #{tpu_custom_call.1} parent=1 // pred_region
      %325 = dma.done [#allocation9], 32
    $region37: #{tpu_custom_call.1} parent=1 // pred_fallthru
      _
    %326 = vsyncpa [#allocation3], 1
    %327 = vsyncpa [#allocation6], 1
    %328 = vsyncpa [#allocation4], 1
    %329 = vsyncpa [#allocation9], 1

</llo_original>
